<compile_context>
chip_gen: v5e
topology: v5e:2x2
jax: 0.10.0
libtpu: 0.0.40
codegen_flags: <defaults>
</compile_context>

<pallas_src>
import functools

import jax
import jax.numpy as jnp
from jax.experimental import pallas as pl
from jax.experimental.pallas import tpu as pltpu


# ----------------------------------------------------------------------------
# Small helpers
# ----------------------------------------------------------------------------
def _largest_divisor_leq(n, cap):
    cap = max(1, min(n, cap))
    for d in range(cap, 0, -1):
        if n % d == 0:
            return d
    return 1


def _pick_cin_tile(cin):
    if cin <= 512:
        return cin
    for cand in (512, 384, 256, 128):
        if cin % cand == 0:
            return cand
    return _largest_divisor_leq(cin, 512)


def _pick_cout_tile(cout):
    if cout <= 256:
        return cout
    if cout % 256 == 0:
        return 256
    if cout % 128 == 0:
        return 128
    return cout


# ----------------------------------------------------------------------------
# Fused 3x3 conv + folded-BN + ReLU kernel (in-kernel im2col, K-tiled acc)
# ----------------------------------------------------------------------------
def _conv3x3_kernel(x_ref, w_ref, b_ref, o_ref, acc_ref, *,
                    wp, m_out, n_ci, apply_relu):
    # x_ref:  (1, Lb, TCIN)  f32/bf16 flattened padded row band (halo included)
    # w_ref:  (9, TCIN, TCO) bf16 (BN scale folded in)
    # b_ref:  (1, TCO)       f32
    # o_ref:  (1, Mout, TCO) f32/bf16
    # acc_ref:(Mout, TCO)    f32 scratch, resident across the Cin grid axis
    ci = pl.program_id(2)

    @pl.when(ci == 0)
    def _init():
        acc_ref[...] = jnp.zeros_like(acc_ref)

    acc = acc_ref[...]
    for t in range(9):                      # static, unrolled: 9 shifted dots
        ky, kx = divmod(t, 3)
        d = ky * wp + kx                    # constant flat-row offset of tap
        patch = x_ref[0, d:d + m_out, :].astype(jnp.bfloat16)
        acc = acc + jnp.dot(patch, w_ref[t],
                            preferred_element_type=jnp.float32)
    acc_ref[...] = acc

    @pl.when(ci == n_ci - 1)
    def _finalize():
        y = acc_ref[...] + b_ref[...]
        if apply_relu:
            y = jnp.maximum(y, 0.0)
        o_ref[0] = y.astype(o_ref.dtype)


# Max rows of the per-tile dot (TH * (W+2)); bounds VMEM independent of H, W.
_MAX_M_ROWS = 2048


def conv3x3_bn_relu(x, layer_params, *, out_dtype=jnp.bfloat16,
                    max_m=_MAX_M_ROWS):
    """3x3 conv (padding=1) + folded BN + ReLU.  x: (N, H, W, Cin)."""
    w9, bias = layer_params                 # w9: (9, Cin, Cout) bf16
    N, H, W, Cin = x.shape
    Cout = w9.shape[2]
    Wp = W + 2

    th = _largest_divisor_leq(H, max(1, max_m // Wp))   # rows per band
    nb = H // th
    m_out = th * Wp                                     # dot rows per band
    lb = (th + 2) * Wp + 8                              # band length (+halo)

    # pad + flatten rows: xf[n, i*Wp + j, c] = x_padded[n, i, j, c]
    xp = jnp.pad(x, ((0, 0), (1, 1), (1, 1), (0, 0)))
    xf = xp.reshape(N, (H + 2) * Wp, Cin)
    xf = jnp.pad(xf, ((0, 0), (0, 8), (0, 0)))
    if nb == 1:
        bands = xf                                       # no halo duplication
    else:
        # overlapping row bands (2-row halo), folded into the batch axis
        bands = jnp.stack(
            [xf[:, b * th * Wp: b * th * Wp + lb, :] for b in range(nb)],
            axis=1).reshape(N * nb, lb, Cin)

    tci = _pick_cin_tile(Cin)
    tco = _pick_cout_tile(Cout)
    n_ci = Cin // tci
    n_co = Cout // tco

    kern = functools.partial(_conv3x3_kernel, wp=Wp, m_out=m_out,
                             n_ci=n_ci, apply_relu=True)
    y = pl.pallas_call(
        kern,
        out_shape=jax.ShapeDtypeStruct((N * nb, m_out, Cout), out_dtype),
        grid_spec=pltpu.PrefetchScalarGridSpec(
            num_scalar_prefetch=0,
            grid=(N * nb, n_co, n_ci),
            in_specs=[
                pl.BlockSpec((1, lb, tci), lambda b, co, ci: (b, 0, ci)),
                pl.BlockSpec((9, tci, tco), lambda b, co, ci: (0, ci, co)),
                pl.BlockSpec((1, tco), lambda b, co, ci: (0, co)),
            ],
            out_specs=pl.BlockSpec((1, m_out, tco), lambda b, co, ci: (b, 0, co)),
            scratch_shapes=[pltpu.VMEM((m_out, tco), jnp.float32)],
        ),
        compiler_params=pltpu.CompilerParams(
            dimension_semantics=("parallel", "parallel", "arbitrary"),
            vmem_limit_bytes=48 * 1024 * 1024,   # v7x-safe (64 MiB physical)
        ),
    )(bands, w9, bias.reshape(1, Cout))

    # drop the 2 padded columns per row and undo the band split
    y = y.reshape(N, nb, th, Wp, Cout)[:, :, :, :W, :]
    return y.reshape(N, H, W, Cout)


def net_module(x, module_params, out_dtype=jnp.bfloat16):
    n = len(module_params)
    for i, p in enumerate(module_params):
        dt = out_dtype if i == n - 1 else jnp.bfloat16
        x = conv3x3_bn_relu(x, p, out_dtype=dt)
    return x


# ----------------------------------------------------------------------------
# 1x1 conv (head) kernel — lane-dense, bias only
# ----------------------------------------------------------------------------
def _matmul_bias_kernel(x_ref, w_ref, b_ref, o_ref, *, apply_relu):
    y = jnp.dot(x_ref[0].astype(jnp.bfloat16), w_ref[...],
                preferred_element_type=jnp.float32)
    y = y + b_ref[...]
    if apply_relu:
        y = jnp.maximum(y, 0.0)
    o_ref[0] = y.astype(o_ref.dtype)


def matmul_bias(x, w, b, *, apply_relu=False, max_m=2048):
    """y[n] = act(x[n] @ w + b).  x: (N, M, K), w: (K, Cout) bf16."""
    N, M, K = x.shape
    Cout = w.shape[1]
    tm = _largest_divisor_leq(M, max_m)
    kern = functools.partial(_matmul_bias_kernel, apply_relu=apply_relu)
    return pl.pallas_call(
        kern,
        out_shape=jax.ShapeDtypeStruct((N, M, Cout), jnp.float32),
        grid_spec=pltpu.PrefetchScalarGridSpec(
            num_scalar_prefetch=0,
            grid=(N, M // tm),
            in_specs=[
                pl.BlockSpec((1, tm, K), lambda n, m: (n, m, 0)),
                pl.BlockSpec((K, Cout), lambda n, m: (0, 0)),
                pl.BlockSpec((1, Cout), lambda n, m: (0, 0)),
            ],
            out_specs=pl.BlockSpec((1, tm, Cout), lambda n, m: (n, m, 0)),
        ),
        compiler_params=pltpu.CompilerParams(
            dimension_semantics=("parallel", "parallel"),
            vmem_limit_bytes=32 * 1024 * 1024,
        ),
    )(x, w, b.reshape(1, Cout))


def head_conv1x1(x, head_params, num_class):
    w, b = head_params                       # w: (64, 128) bf16 zero-padded
    N, H, W, C = x.shape
    y = matmul_bias(x.reshape(N, H * W, C), w, b, apply_relu=False)
    return y.reshape(N, H, W, -1)[..., :num_class]


# ----------------------------------------------------------------------------
# CoordAtt — fully fused per batch element
# ----------------------------------------------------------------------------
def _coordatt_kernel(x_ref, w1_ref, s1_ref, b1_ref,
                     wh_ref, bh_ref, ww_ref, bw_ref, o_ref):
    x = x_ref[0].astype(jnp.float32)            # (H, W, C)
    x_h = jnp.mean(x, axis=1)                   # pool over width  -> (H, C)
    x_w = jnp.mean(x, axis=0)                   # pool over height -> (W, C)

    def mid(v):
        y = jnp.dot(v, w1_ref[...], preferred_element_type=jnp.float32)
        y = y * s1_ref[...] + b1_ref[...]       # conv1 bias + bn1 folded
        # h_swish(y) = y * relu6(y + 3) / 6
        return y * jnp.clip(y + 3.0, 0.0, 6.0) * (1.0 / 6.0)

    y_h = mid(x_h)
    y_w = mid(x_w)
    z_h = jnp.dot(y_h, wh_ref[...], preferred_element_type=jnp.float32) + bh_ref[...]
    z_w = jnp.dot(y_w, ww_ref[...], preferred_element_type=jnp.float32) + bw_ref[...]
    a_h = 1.0 / (1.0 + jnp.exp(-z_h))           # (H, C)
    a_w = 1.0 / (1.0 + jnp.exp(-z_w))           # (W, C)
    o_ref[0] = (x * a_w[None, :, :] * a_h[:, None, :]).astype(o_ref.dtype)


def coord_att(x, ca_params):
    w1, s1, b1, wh, bh, ww, bw = ca_params
    N, H, W, C = x.shape
    mip = w1.shape[1]
    return pl.pallas_call(
        _coordatt_kernel,
        out_shape=jax.ShapeDtypeStruct((N, H, W, C), jnp.float32),
        grid_spec=pltpu.PrefetchScalarGridSpec(
            num_scalar_prefetch=0,
            grid=(N,),
            in_specs=[
                pl.BlockSpec((1, H, W, C), lambda n: (n, 0, 0, 0)),
                pl.BlockSpec((C, mip), lambda n: (0, 0)),
                pl.BlockSpec((1, mip), lambda n: (0, 0)),
                pl.BlockSpec((1, mip), lambda n: (0, 0)),
                pl.BlockSpec((mip, C), lambda n: (0, 0)),
                pl.BlockSpec((1, C), lambda n: (0, 0)),
                pl.BlockSpec((mip, C), lambda n: (0, 0)),
                pl.BlockSpec((1, C), lambda n: (0, 0)),
            ],
            out_specs=pl.BlockSpec((1, H, W, C), lambda n: (n, 0, 0, 0)),
        ),
        compiler_params=pltpu.CompilerParams(
            dimension_semantics=("parallel",),
            vmem_limit_bytes=32 * 1024 * 1024,
        ),
    )(x, w1, s1, b1, wh, bh, ww, bw)


# ----------------------------------------------------------------------------
# Cheap glue (pure JAX)
# ----------------------------------------------------------------------------
def max_pool(x, k):
    N, H, W, C = x.shape
    return x.reshape(N, H // k, k, W // k, k, C).max(axis=(2, 4))


def upsample_nearest(x, k):
    # single broadcast + reshape (no double jnp.repeat materialization)
    N, H, W, C = x.shape
    x = jnp.broadcast_to(x[:, :, None, :, None, :], (N, H, k, W, k, C))
    return x.reshape(N, H * k, W * k, C)


# ----------------------------------------------------------------------------
# Parameter initialization (deterministic, synthetic)
# ----------------------------------------------------------------------------
def _init_conv_bn(key, cin, cout):
    k1, k2, k3, k4 = jax.random.split(key, 4)
    fan_in = 9.0 * cin
    w = jax.random.normal(k1, (9, cin, cout), jnp.float32) / jnp.sqrt(fan_in)
    b = 0.01 * jax.random.normal(k2, (cout,), jnp.float32)
    gamma = 1.0 + 0.1 * jax.random.normal(k3, (cout,), jnp.float32)
    beta = 0.1 * jax.random.normal(k4, (cout,), jnp.float32)
    mean = jnp.zeros((cout,), jnp.float32)
    var = jnp.ones((cout,), jnp.float32)
    eps = 1e-5
    scale = gamma / jnp.sqrt(var + eps)
    # fold BN scale into the weight columns; keep bias in f32
    w_folded = (w * scale[None, None, :]).astype(jnp.bfloat16)
    bias = (b - mean) * scale + beta
    return (w_folded, bias)


def init_params(key, num_class):
    keys = iter(jax.random.split(key, 64))
    cbn = lambda cin, cout: _init_conv_bn(next(keys), cin, cout)
    p = {}
    p["conv1"] = [cbn(3, 32), cbn(32, 32), cbn(32, 64)]
    p["conv2"] = [cbn(64, 128), cbn(128, 128)]
    p["conv3"] = [cbn(128, 256), cbn(256, 256)]
    p["conv4"] = [cbn(256, 512), cbn(512, 512)]
    p["conv5"] = [cbn(512, 1024), cbn(1024, 1024)]
    p["conv6"] = [cbn(1536, 512), cbn(512, 512)]
    p["conv7"] = [cbn(768, 256), cbn(256, 256)]
    p["conv8"] = [cbn(384, 128), cbn(128, 128)]
    p["conv9"] = [cbn(192, 64), cbn(64, 64)]

    # CoordAtt(64, 64, reduction=4) -> mip = max(8, 64 // 4) = 16
    C, mip, eps = 64, 16, 1e-5
    ks = jax.random.split(next(keys), 8)
    w1 = jax.random.normal(ks[0], (C, mip), jnp.float32) / jnp.sqrt(float(C))
    b1 = 0.01 * jax.random.normal(ks[1], (mip,), jnp.float32)
    g1 = 1.0 + 0.1 * jax.random.normal(ks[2], (mip,), jnp.float32)
    be1 = 0.1 * jax.random.normal(ks[3], (mip,), jnp.float32)
    scale1 = g1 / jnp.sqrt(1.0 + eps)
    bias1 = b1 * scale1 + be1
    wh = jax.random.normal(ks[4], (mip, C), jnp.float32) / jnp.sqrt(float(mip))
    bh = 0.01 * jax.random.normal(ks[5], (C,), jnp.float32)
    ww = jax.random.normal(ks[6], (mip, C), jnp.float32) / jnp.sqrt(float(mip))
    bw = 0.01 * jax.random.normal(ks[7], (C,), jnp.float32)
    p["ca"] = (w1, scale1.reshape(1, mip), bias1.reshape(1, mip),
               wh, bh.reshape(1, C), ww, bw.reshape(1, C))

    # head (assumed 1x1 conv) padded to 128 output lanes for unmasked stores
    kh1, kh2 = jax.random.split(next(keys))
    head_pad = 128
    w_head = jax.random.normal(kh1, (64, num_class), jnp.float32) / jnp.sqrt(64.0)
    b_head = 0.01 * jax.random.normal(kh2, (num_class,), jnp.float32)
    w_head = jnp.pad(w_head, ((0, 0), (0, head_pad - num_class))).astype(jnp.bfloat16)
    b_head = jnp.pad(b_head, (0, head_pad - num_class))
    p["head"] = (w_head, b_head)
    return p


# ----------------------------------------------------------------------------
# Full forward (mirrors BsiNet_2.forward)
# ----------------------------------------------------------------------------
def bsinet2_forward(x_nchw, params, num_class):
    x = jnp.transpose(x_nchw, (0, 2, 3, 1)).astype(jnp.float32)   # -> NHWC

    x1 = net_module(x, params["conv1"])
    x2 = max_pool(net_module(x1, params["conv2"]), 2)
    x3 = max_pool(net_module(x2, params["conv3"]), 2)
    x4 = max_pool(net_module(x3, params["conv4"]), 2)
    x5 = max_pool(net_module(x4, params["conv5"]), 4)

    x_6 = upsample_nearest(x5, 4)
    x6 = upsample_nearest(net_module(jnp.concatenate([x_6, x4], -1), params["conv6"]), 2)
    x7 = upsample_nearest(net_module(jnp.concatenate([x6, x3], -1), params["conv7"]), 2)
    x8 = upsample_nearest(net_module(jnp.concatenate([x7, x2], -1), params["conv8"]), 2)
    x9 = net_module(jnp.concatenate([x8, x1], -1), params["conv9"],
                    out_dtype=jnp.float32)

    xca = coord_att(x9, params["ca"])
    out = head_conv1x1(xca, params["head"], num_class)

    # back to NCHW to mirror the PyTorch return convention: (out, x)
    return (jnp.transpose(out, (0, 3, 1, 2)),
            jnp.transpose(xca, (0, 3, 1, 2)))


if __name__ == "__main__":
    num_class = 2
    key = jax.random.PRNGKey(0)
    kx, kp, kc = jax.random.split(key, 3)

    # --- correctness self-check of the fused conv kernel (multi-band path) ---
    cin_c, cout_c, h_c, w_c = 16, 32, 8, 8
    chk_params = _init_conv_bn(kc, cin_c, cout_c)
    xc = jax.random.normal(kx, (1, h_c, w_c, cin_c), jnp.float32)
    xc = xc.astype(jnp.bfloat16).astype(jnp.float32)     # make bf16 cast lossless
    y_kernel = conv3x3_bn_relu(xc, chk_params, out_dtype=jnp.float32,
                               max_m=40)                  # forces 2 row-bands
    w9_c, bias_c = chk_params
    w_hwio = w9_c.astype(jnp.float32).reshape(3, 3, cin_c, cout_c)
    y_ref = jax.lax.conv_general_dilated(
        xc, w_hwio, (1, 1), ((1, 1), (1, 1)),
        dimension_numbers=("NHWC", "HWIO", "NHWC"))
    y_ref = jnp.maximum(y_ref + bias_c, 0.0)
    assert jnp.allclose(y_kernel, y_ref, atol=1e-3, rtol=1e-3), \
        float(jnp.max(jnp.abs(y_kernel - y_ref)))

    # --- full forward ---
    # Smallest spatial size compatible with the pooling stack (2,2,2 then 4): 32x32.
    x = jax.random.normal(kx, (2, 3, 32, 32), jnp.float32)
    params = init_params(kp, num_class)

    fwd = jax.jit(lambda a, p: bsinet2_forward(a, p, num_class))
    out, feat = fwd(x, params)
    jax.block_until_ready((out, feat))

    assert out.shape == (2, num_class, 32, 32), out.shape
    assert feat.shape == (2, 64, 32, 32), feat.shape
    assert jnp.all(jnp.isfinite(out)) and jnp.all(jnp.isfinite(feat))
    print("KERNEL_OK")
</pallas_src>

<mosaic_0001>
module attributes {stable_mosaic.version = 11 : i64} {
  func.func @_conv3x3_kernel(%arg0: i32, %arg1: i32, %arg2: i32, %arg3: memref<1x68x16xf32, #tpu.memory_space<vmem>>, %arg4: memref<9x16x32xbf16, #tpu.memory_space<vmem>>, %arg5: memref<1x32xf32, #tpu.memory_space<vmem>>, %arg6: memref<1x40x32xf32, #tpu.memory_space<vmem>>, %arg7: memref<40x32xf32, #tpu.memory_space<vmem>>) attributes {dimension_semantics = [#tpu.dimension_semantics<parallel>, #tpu.dimension_semantics<parallel>, #tpu.dimension_semantics<arbitrary>], iteration_bounds = array<i64: 2, 1, 1>, scalar_prefetch = 0 : i64, scratch_operands = 1 : i64, tpu.core_type = #tpu.core_type<tc>, window_params = [{transform_indices = @transform_0, window_bounds = array<i64: 1, 68, 16>}, {transform_indices = @transform_1, window_bounds = array<i64: 9, 16, 32>}, {transform_indices = @transform_2, window_bounds = array<i64: 1, 32>}, {transform_indices = @transform_3, window_bounds = array<i64: 1, 40, 32>}]} {
    %c0_i32 = arith.constant 0 : i32
    %0 = arith.cmpi eq, %arg2, %c0_i32 : i32
    %1 = arith.extui %0 : i1 to i32
    %c0_i32_0 = arith.constant 0 : i32
    %2 = arith.cmpi ne, %1, %c0_i32_0 : i32
    scf.if %2 {
      %cst_54 = arith.constant 0.000000e+00 : f32
      %71 = vector.broadcast %cst_54 : f32 to vector<40x32xf32>
      %c0_55 = arith.constant 0 : index
      %c0_56 = arith.constant 0 : index
      %72 = vector.load %arg7[%c0_55, %c0_56] : memref<40x32xf32, #tpu.memory_space<vmem>>, vector<40x32xf32>
      tpu.vector_store %arg7[%c0_55, %c0_56], %71 {strides = array<i32>} : memref<40x32xf32, #tpu.memory_space<vmem>>, vector<40x32xf32>,
    } else {
    }
    %c0 = arith.constant 0 : index
    %c0_1 = arith.constant 0 : index
    %3 = vector.load %arg7[%c0, %c0_1] : memref<40x32xf32, #tpu.memory_space<vmem>>, vector<40x32xf32>
    %c0_2 = arith.constant 0 : index
    %c0_3 = arith.constant 0 : index
    %c0_4 = arith.constant 0 : index
    %4 = vector.load %arg3[%c0_2, %c0_3, %c0_4] : memref<1x68x16xf32, #tpu.memory_space<vmem>>, vector<1x40x16xf32>
    %5 = vector.shape_cast %4 : vector<1x40x16xf32> to vector<40x16xf32>
    %6 = arith.truncf %5 : vector<40x16xf32> to vector<40x16xbf16>
    %c0_5 = arith.constant 0 : index
    %c0_6 = arith.constant 0 : index
    %c0_7 = arith.constant 0 : index
    %7 = vector.load %arg4[%c0_5, %c0_6, %c0_7] : memref<9x16x32xbf16, #tpu.memory_space<vmem>>, vector<1x16x32xbf16>
    %8 = vector.shape_cast %7 : vector<1x16x32xbf16> to vector<16x32xbf16>
    %cst = arith.constant dense<0.000000e+00> : vector<40x32xf32>
    %9 = tpu.matmul %6, %8, %cst {dimension_numbers = #tpu.dot_dimension_numbers<[1], [0], [0], [1], [0, 0, 1, 1], [], []>} : vector<40x16xbf16>, vector<16x32xbf16>, vector<40x32xf32> -> vector<40x32xf32>
    %10 = arith.addf %3, %9 : vector<40x32xf32>
    %c0_8 = arith.constant 0 : index
    %c1 = arith.constant 1 : index
    %c0_9 = arith.constant 0 : index
    %11 = vector.load %arg3[%c0_8, %c1, %c0_9] : memref<1x68x16xf32, #tpu.memory_space<vmem>>, vector<1x40x16xf32>
    %12 = vector.shape_cast %11 : vector<1x40x16xf32> to vector<40x16xf32>
    %13 = arith.truncf %12 : vector<40x16xf32> to vector<40x16xbf16>
    %c1_10 = arith.constant 1 : index
    %c0_11 = arith.constant 0 : index
    %c0_12 = arith.constant 0 : index
    %14 = vector.load %arg4[%c1_10, %c0_11, %c0_12] : memref<9x16x32xbf16, #tpu.memory_space<vmem>>, vector<1x16x32xbf16>
    %15 = vector.shape_cast %14 : vector<1x16x32xbf16> to vector<16x32xbf16>
    %cst_13 = arith.constant dense<0.000000e+00> : vector<40x32xf32>
    %16 = tpu.matmul %13, %15, %cst_13 {dimension_numbers = #tpu.dot_dimension_numbers<[1], [0], [0], [1], [0, 0, 1, 1], [], []>} : vector<40x16xbf16>, vector<16x32xbf16>, vector<40x32xf32> -> vector<40x32xf32>
    %17 = arith.addf %10, %16 : vector<40x32xf32>
    %c0_14 = arith.constant 0 : index
    %c2 = arith.constant 2 : index
    %c0_15 = arith.constant 0 : index
    %18 = vector.load %arg3[%c0_14, %c2, %c0_15] : memref<1x68x16xf32, #tpu.memory_space<vmem>>, vector<1x40x16xf32>
    %19 = vector.shape_cast %18 : vector<1x40x16xf32> to vector<40x16xf32>
    %20 = arith.truncf %19 : vector<40x16xf32> to vector<40x16xbf16>
    %c2_16 = arith.constant 2 : index
    %c0_17 = arith.constant 0 : index
    %c0_18 = arith.constant 0 : index
    %21 = vector.load %arg4[%c2_16, %c0_17, %c0_18] : memref<9x16x32xbf16, #tpu.memory_space<vmem>>, vector<1x16x32xbf16>
    %22 = vector.shape_cast %21 : vector<1x16x32xbf16> to vector<16x32xbf16>
    %cst_19 = arith.constant dense<0.000000e+00> : vector<40x32xf32>
    %23 = tpu.matmul %20, %22, %cst_19 {dimension_numbers = #tpu.dot_dimension_numbers<[1], [0], [0], [1], [0, 0, 1, 1], [], []>} : vector<40x16xbf16>, vector<16x32xbf16>, vector<40x32xf32> -> vector<40x32xf32>
    %24 = arith.addf %17, %23 : vector<40x32xf32>
    %c0_20 = arith.constant 0 : index
    %c10 = arith.constant 10 : index
    %c0_21 = arith.constant 0 : index
    %25 = vector.load %arg3[%c0_20, %c10, %c0_21] : memref<1x68x16xf32, #tpu.memory_space<vmem>>, vector<1x40x16xf32>
    %26 = vector.shape_cast %25 : vector<1x40x16xf32> to vector<40x16xf32>
    %27 = arith.truncf %26 : vector<40x16xf32> to vector<40x16xbf16>
    %c3 = arith.constant 3 : index
    %c0_22 = arith.constant 0 : index
    %c0_23 = arith.constant 0 : index
    %28 = vector.load %arg4[%c3, %c0_22, %c0_23] : memref<9x16x32xbf16, #tpu.memory_space<vmem>>, vector<1x16x32xbf16>
    %29 = vector.shape_cast %28 : vector<1x16x32xbf16> to vector<16x32xbf16>
    %cst_24 = arith.constant dense<0.000000e+00> : vector<40x32xf32>
    %30 = tpu.matmul %27, %29, %cst_24 {dimension_numbers = #tpu.dot_dimension_numbers<[1], [0], [0], [1], [0, 0, 1, 1], [], []>} : vector<40x16xbf16>, vector<16x32xbf16>, vector<40x32xf32> -> vector<40x32xf32>
    %31 = arith.addf %24, %30 : vector<40x32xf32>
    %c0_25 = arith.constant 0 : index
    %c11 = arith.constant 11 : index
    %c0_26 = arith.constant 0 : index
    %32 = vector.load %arg3[%c0_25, %c11, %c0_26] : memref<1x68x16xf32, #tpu.memory_space<vmem>>, vector<1x40x16xf32>
    %33 = vector.shape_cast %32 : vector<1x40x16xf32> to vector<40x16xf32>
    %34 = arith.truncf %33 : vector<40x16xf32> to vector<40x16xbf16>
    %c4 = arith.constant 4 : index
    %c0_27 = arith.constant 0 : index
    %c0_28 = arith.constant 0 : index
    %35 = vector.load %arg4[%c4, %c0_27, %c0_28] : memref<9x16x32xbf16, #tpu.memory_space<vmem>>, vector<1x16x32xbf16>
    %36 = vector.shape_cast %35 : vector<1x16x32xbf16> to vector<16x32xbf16>
    %cst_29 = arith.constant dense<0.000000e+00> : vector<40x32xf32>
    %37 = tpu.matmul %34, %36, %cst_29 {dimension_numbers = #tpu.dot_dimension_numbers<[1], [0], [0], [1], [0, 0, 1, 1], [], []>} : vector<40x16xbf16>, vector<16x32xbf16>, vector<40x32xf32> -> vector<40x32xf32>
    %38 = arith.addf %31, %37 : vector<40x32xf32>
    %c0_30 = arith.constant 0 : index
    %c12 = arith.constant 12 : index
    %c0_31 = arith.constant 0 : index
    %39 = vector.load %arg3[%c0_30, %c12, %c0_31] : memref<1x68x16xf32, #tpu.memory_space<vmem>>, vector<1x40x16xf32>
    %40 = vector.shape_cast %39 : vector<1x40x16xf32> to vector<40x16xf32>
    %41 = arith.truncf %40 : vector<40x16xf32> to vector<40x16xbf16>
    %c5 = arith.constant 5 : index
    %c0_32 = arith.constant 0 : index
    %c0_33 = arith.constant 0 : index
    %42 = vector.load %arg4[%c5, %c0_32, %c0_33] : memref<9x16x32xbf16, #tpu.memory_space<vmem>>, vector<1x16x32xbf16>
    %43 = vector.shape_cast %42 : vector<1x16x32xbf16> to vector<16x32xbf16>
    %cst_34 = arith.constant dense<0.000000e+00> : vector<40x32xf32>
    %44 = tpu.matmul %41, %43, %cst_34 {dimension_numbers = #tpu.dot_dimension_numbers<[1], [0], [0], [1], [0, 0, 1, 1], [], []>} : vector<40x16xbf16>, vector<16x32xbf16>, vector<40x32xf32> -> vector<40x32xf32>
    %45 = arith.addf %38, %44 : vector<40x32xf32>
    %c0_35 = arith.constant 0 : index
    %c20 = arith.constant 20 : index
    %c0_36 = arith.constant 0 : index
    %46 = vector.load %arg3[%c0_35, %c20, %c0_36] : memref<1x68x16xf32, #tpu.memory_space<vmem>>, vector<1x40x16xf32>
    %47 = vector.shape_cast %46 : vector<1x40x16xf32> to vector<40x16xf32>
    %48 = arith.truncf %47 : vector<40x16xf32> to vector<40x16xbf16>
    %c6 = arith.constant 6 : index
    %c0_37 = arith.constant 0 : index
    %c0_38 = arith.constant 0 : index
    %49 = vector.load %arg4[%c6, %c0_37, %c0_38] : memref<9x16x32xbf16, #tpu.memory_space<vmem>>, vector<1x16x32xbf16>
    %50 = vector.shape_cast %49 : vector<1x16x32xbf16> to vector<16x32xbf16>
    %cst_39 = arith.constant dense<0.000000e+00> : vector<40x32xf32>
    %51 = tpu.matmul %48, %50, %cst_39 {dimension_numbers = #tpu.dot_dimension_numbers<[1], [0], [0], [1], [0, 0, 1, 1], [], []>} : vector<40x16xbf16>, vector<16x32xbf16>, vector<40x32xf32> -> vector<40x32xf32>
    %52 = arith.addf %45, %51 : vector<40x32xf32>
    %c0_40 = arith.constant 0 : index
    %c21 = arith.constant 21 : index
    %c0_41 = arith.constant 0 : index
    %53 = vector.load %arg3[%c0_40, %c21, %c0_41] : memref<1x68x16xf32, #tpu.memory_space<vmem>>, vector<1x40x16xf32>
    %54 = vector.shape_cast %53 : vector<1x40x16xf32> to vector<40x16xf32>
    %55 = arith.truncf %54 : vector<40x16xf32> to vector<40x16xbf16>
    %c7 = arith.constant 7 : index
    %c0_42 = arith.constant 0 : index
    %c0_43 = arith.constant 0 : index
    %56 = vector.load %arg4[%c7, %c0_42, %c0_43] : memref<9x16x32xbf16, #tpu.memory_space<vmem>>, vector<1x16x32xbf16>
    %57 = vector.shape_cast %56 : vector<1x16x32xbf16> to vector<16x32xbf16>
    %cst_44 = arith.constant dense<0.000000e+00> : vector<40x32xf32>
    %58 = tpu.matmul %55, %57, %cst_44 {dimension_numbers = #tpu.dot_dimension_numbers<[1], [0], [0], [1], [0, 0, 1, 1], [], []>} : vector<40x16xbf16>, vector<16x32xbf16>, vector<40x32xf32> -> vector<40x32xf32>
    %59 = arith.addf %52, %58 : vector<40x32xf32>
    %c0_45 = arith.constant 0 : index
    %c22 = arith.constant 22 : index
    %c0_46 = arith.constant 0 : index
    %60 = vector.load %arg3[%c0_45, %c22, %c0_46] : memref<1x68x16xf32, #tpu.memory_space<vmem>>, vector<1x40x16xf32>
    %61 = vector.shape_cast %60 : vector<1x40x16xf32> to vector<40x16xf32>
    %62 = arith.truncf %61 : vector<40x16xf32> to vector<40x16xbf16>
    %c8 = arith.constant 8 : index
    %c0_47 = arith.constant 0 : index
    %c0_48 = arith.constant 0 : index
    %63 = vector.load %arg4[%c8, %c0_47, %c0_48] : memref<9x16x32xbf16, #tpu.memory_space<vmem>>, vector<1x16x32xbf16>
    %64 = vector.shape_cast %63 : vector<1x16x32xbf16> to vector<16x32xbf16>
    %cst_49 = arith.constant dense<0.000000e+00> : vector<40x32xf32>
    %65 = tpu.matmul %62, %64, %cst_49 {dimension_numbers = #tpu.dot_dimension_numbers<[1], [0], [0], [1], [0, 0, 1, 1], [], []>} : vector<40x16xbf16>, vector<16x32xbf16>, vector<40x32xf32> -> vector<40x32xf32>
    %66 = arith.addf %59, %65 : vector<40x32xf32>
    %c0_50 = arith.constant 0 : index
    %c0_51 = arith.constant 0 : index
    %67 = vector.load %arg7[%c0_50, %c0_51] : memref<40x32xf32, #tpu.memory_space<vmem>>, vector<40x32xf32>
    tpu.vector_store %arg7[%c0_50, %c0_51], %66 {strides = array<i32>} : memref<40x32xf32, #tpu.memory_space<vmem>>, vector<40x32xf32>,
    %c0_i32_52 = arith.constant 0 : i32
    %68 = arith.cmpi eq, %arg2, %c0_i32_52 : i32
    %69 = arith.extui %68 : i1 to i32
    %c0_i32_53 = arith.constant 0 : i32
    %70 = arith.cmpi ne, %69, %c0_i32_53 : i32
    scf.if %70 {
      %c0_54 = arith.constant 0 : index
      %c0_55 = arith.constant 0 : index
      %71 = vector.load %arg7[%c0_54, %c0_55] : memref<40x32xf32, #tpu.memory_space<vmem>>, vector<40x32xf32>
      %c0_56 = arith.constant 0 : index
      %c0_57 = arith.constant 0 : index
      %72 = vector.load %arg5[%c0_56, %c0_57] : memref<1x32xf32, #tpu.memory_space<vmem>>, vector<1x32xf32>
      %73 = vector.broadcast %72 : vector<1x32xf32> to vector<40x32xf32>
      %74 = arith.addf %71, %73 : vector<40x32xf32>
      %cst_58 = arith.constant 0.000000e+00 : f32
      %75 = vector.broadcast %cst_58 : f32 to vector<40x32xf32>
      %76 = arith.maximumf %74, %75 : vector<40x32xf32>
      %c0_59 = arith.constant 0 : index
      %c0_60 = arith.constant 0 : index
      %c0_61 = arith.constant 0 : index
      %77 = vector.load %arg6[%c0_59, %c0_60, %c0_61] : memref<1x40x32xf32, #tpu.memory_space<vmem>>, vector<1x40x32xf32>
      %78 = vector.shape_cast %77 : vector<1x40x32xf32> to vector<40x32xf32>
      %79 = vector.shape_cast %76 : vector<40x32xf32> to vector<1x40x32xf32>
      tpu.vector_store %arg6[%c0_59, %c0_60, %c0_61], %79 {strides = array<i32>} : memref<1x40x32xf32, #tpu.memory_space<vmem>>, vector<1x40x32xf32>,
    } else {
    }
    return
  }
  func.func @transform_0(%arg0: i32, %arg1: i32, %arg2: i32) -> (i32, i32, i32) {
    %c0_i32 = arith.constant 0 : i32
    %c0_i32_0 = arith.constant 0 : i32
    return %arg0, %c0_i32, %arg2 : i32, i32, i32
  }
  func.func @transform_1(%arg0: i32, %arg1: i32, %arg2: i32) -> (i32, i32, i32) {
    %c0_i32 = arith.constant 0 : i32
    %c0_i32_0 = arith.constant 0 : i32
    return %c0_i32, %arg2, %arg1 : i32, i32, i32
  }
  func.func @transform_2(%arg0: i32, %arg1: i32, %arg2: i32) -> (i32, i32) {
    %c0_i32 = arith.constant 0 : i32
    %c0_i32_0 = arith.constant 0 : i32
    return %c0_i32, %arg1 : i32, i32
  }
  func.func @transform_3(%arg0: i32, %arg1: i32, %arg2: i32) -> (i32, i32, i32) {
    %c0_i32 = arith.constant 0 : i32
    %c0_i32_0 = arith.constant 0 : i32
    return %arg0, %c0_i32, %arg1 : i32, i32, i32
  }
}

</mosaic_0001>

<llo_original>
// kernel: tpu_custom_call.1
$region0: #{tpu_custom_call.1}
  #allocation0 [shape = 'u32[]', space=smem, size = 0x4, offset = 0x4, fixed_abs, tag = 'smem constant byte address 0x4 - core index']
  #allocation1 [shape = 'u32[72,128]{1,0:T(1,128)}', space=vmem, size = 0x9000, scoped, tag = 'internal scratch']
  #allocation2 [shape = 'f32[40,32]{1,0:T(8,128)}', space=vmem, size = 0x5000, scoped, tag = 'scratch operand']
  %s0 = inlined_call_operand.vmem [shape: f32[2,68,16], index: 0, kind: input, shape index: {}]
  %s1 = inlined_call_operand.vmem [shape: bf16[9,16,32], index: 1, kind: input, shape index: {}]
  %s2 = inlined_call_operand.vmem [shape: f32[1,32], index: 2, kind: input, shape index: {}]
  %s3 = inlined_call_operand.vmem [shape: f32[2,40,32], index: 3, kind: output, shape index: {}]
  %s4 = sld [smem:[#allocation0]]
  $region53: #{tpu_custom_call.1} parent=0
    _
  %s6 = ssub.s32 1, %s4
  %s7 = scalar_select 0, %s6, %s4
  loop: start=0, step=1, limit=4
  $region2: #{tpu_custom_call.1} parent=0 // loop_pre_header
    _
  $region3: #{tpu_custom_call.1} parent=0 // loop_header
    %s9 = sphi 0, %s13
    %p10 = scmp.ge.s32.totalorder %s9, 4
    %s16 = sphi 0, %s35
    %s17 = sphi 0, %s31
    %s18 = sphi 0, %s27
    %s19 = sphi 0, %s16
    %s20 = sphi 0, %s17
    %s21 = sphi 0, %s18
    %s22 = sphi 0, %s19
    %s23 = sphi 0, %s20
    %s24 = sphi 0, %s21
    %s40 = sphi 0, %s42
    %s43 = sphi 0, %s40
    %s44 = sphi 0, %s43
    %s60 = sphi 0, %s44
    %s68 = sphi 0, %s70
    %s71 = sphi 0, %s68
    %s72 = sphi 0, %s71
    %s88 = sphi 0, %s72
    %s94 = sphi 0, %s96
    %s97 = sphi 0, %s94
    %s98 = sphi 0, %s97
    %s114 = sphi 0, %s98
    %s122 = sphi 0, %s124
    %s125 = sphi 0, %s122
    %s126 = sphi 0, %s125
    %s142 = sphi 0, %s126
  $region4: #{tpu_custom_call.1} parent=0 // loop_header_branch
    %12 = sbr.rel (%p10) target = $region8
  $region5: #{tpu_custom_call.1} parent=0 // loop_body
    %s14 = ssub.s32 %s9, 1
    %s15 = ssub.s32 %s9, 2
    %s25 = sadd.s32 1, %s18
    %p26 = scmp.ge.s32.totalorder %s25, 1
    %s27 = scalar_select %p26, 0, %s25
    %s28 = sadd.s32 1, %s17
    %s29 = scalar_select %p26, %s28, %s17
    %p30 = scmp.ge.s32.totalorder %s29, 1
    %s31 = scalar_select %p30, 0, %s29
    %s32 = sadd.s32 1, %s16
    %s33 = scalar_select %p30, %s32, %s16
    %p34 = scmp.ge.s32.totalorder %s33, 2
    %s35 = scalar_select %p34, 0, %s33
    %s36 = ssub.s32 %s16, %s35
    %s37 = ssub.s32 %s18, %s27
    %s38 = sor.u32 %s36, %s37
    %p39 = scmp.eq.s32.totalorder %s38, 0
    %s41 = sadd.s32 %s40, 1
    %s42 = scalar_select %p39, %s40, %s41
    %p45 = pneg %p39
    %p46 = scmp.eq.s32.totalorder %s9, 1
    %p47 = por %p45, %p46
    %p48 = scmp.ne.s32.totalorder %s40, %s43
    %p49 = scmp.eq.s32.totalorder %s9, 0
    %p50 = por %p48, %p49
    %p51 = scmp.ne.s32.totalorder %s40, %s43
    %p52 = scmp.eq.s32.totalorder %s14, 1
    %p53 = por %p51, %p52
    %p54 = scmp.ne.s32.totalorder %s43, %s44
    %p55 = scmp.eq.s32.totalorder %s14, 0
    %p56 = por %p54, %p55
    %p57 = scmp.ne.s32.totalorder %s43, %s44
    %p58 = scmp.eq.s32.totalorder %s15, 1
    %p59 = por %p57, %p58
    %p61 = scmp.ne.s32.totalorder %s44, %s60
    %p62 = scmp.eq.s32.totalorder %s15, 0
    %p63 = por %p61, %p62
    %s64 = ssub.s32 %s18, %s27
    %s65 = ssub.s32 %s17, %s31
    %s66 = sor.u32 %s64, %s65
    %p67 = scmp.eq.s32.totalorder %s66, 0
    %s69 = sadd.s32 %s68, 1
    %s70 = scalar_select %p67, %s68, %s69
    %p73 = pneg %p67
    %p74 = scmp.eq.s32.totalorder %s9, 1
    %p75 = por %p73, %p74
    %p76 = scmp.ne.s32.totalorder %s68, %s71
    %p77 = scmp.eq.s32.totalorder %s9, 0
    %p78 = por %p76, %p77
    %p79 = scmp.ne.s32.totalorder %s68, %s71
    %p80 = scmp.eq.s32.totalorder %s14, 1
    %p81 = por %p79, %p80
    %p82 = scmp.ne.s32.totalorder %s71, %s72
    %p83 = scmp.eq.s32.totalorder %s14, 0
    %p84 = por %p82, %p83
    %p85 = scmp.ne.s32.totalorder %s71, %s72
    %p86 = scmp.eq.s32.totalorder %s15, 1
    %p87 = por %p85, %p86
    %p89 = scmp.ne.s32.totalorder %s72, %s88
    %p90 = scmp.eq.s32.totalorder %s15, 0
    %p91 = por %p89, %p90
    %s92 = ssub.s32 %s17, %s31
    %p93 = scmp.eq.s32.totalorder %s92, 0
    %s95 = sadd.s32 %s94, 1
    %s96 = scalar_select %p93, %s94, %s95
    %p99 = pneg %p93
    %p100 = scmp.eq.s32.totalorder %s9, 1
    %p101 = por %p99, %p100
    %p102 = scmp.ne.s32.totalorder %s94, %s97
    %p103 = scmp.eq.s32.totalorder %s9, 0
    %p104 = por %p102, %p103
    %p105 = scmp.ne.s32.totalorder %s94, %s97
    %p106 = scmp.eq.s32.totalorder %s14, 1
    %p107 = por %p105, %p106
    %p108 = scmp.ne.s32.totalorder %s97, %s98
    %p109 = scmp.eq.s32.totalorder %s14, 0
    %p110 = por %p108, %p109
    %p111 = scmp.ne.s32.totalorder %s97, %s98
    %p112 = scmp.eq.s32.totalorder %s15, 1
    %p113 = por %p111, %p112
    %p115 = scmp.ne.s32.totalorder %s98, %s114
    %p116 = scmp.eq.s32.totalorder %s15, 0
    %p117 = por %p115, %p116
    %s118 = ssub.s32 %s16, %s35
    %s119 = ssub.s32 %s17, %s31
    %s120 = sor.u32 %s118, %s119
    %p121 = scmp.eq.s32.totalorder %s120, 0
    %s123 = sadd.s32 %s122, 1
    %s124 = scalar_select %p121, %s122, %s123
    %p127 = pneg %p121
    %p128 = scmp.eq.s32.totalorder %s9, 1
    %p129 = por %p127, %p128
    %p130 = scmp.ne.s32.totalorder %s122, %s125
    %p131 = scmp.eq.s32.totalorder %s9, 0
    %p132 = por %p130, %p131
    %p133 = scmp.ne.s32.totalorder %s122, %s125
    %p134 = scmp.eq.s32.totalorder %s14, 1
    %p135 = por %p133, %p134
    %p136 = scmp.ne.s32.totalorder %s125, %s126
    %p137 = scmp.eq.s32.totalorder %s14, 0
    %p138 = por %p136, %p137
    %p139 = scmp.ne.s32.totalorder %s125, %s126
    %p140 = scmp.eq.s32.totalorder %s15, 1
    %p141 = por %p139, %p140
    %p143 = scmp.ne.s32.totalorder %s126, %s142
    %p144 = scmp.eq.s32.totalorder %s15, 0
    %p145 = por %p143, %p144
    %p146 = scmp.le.s32.totalorder 1, %s9
    %p147 = scmp.lt.s32.totalorder %s9, 3
    %p148 = pnand %p146, %p147
    %p149 = pneg %p148
    // Predicated region
    $region9: #{tpu_custom_call.1} parent=5 // pred_check
      _
    $region10: #{tpu_custom_call.1} parent=5 // pred_check_branch
      %151 = sbr.rel (%p148) target = $region12
    $region11: #{tpu_custom_call.1} parent=5 // pred_region
      %s152 = ssub.s32 %s9, 1
      // Predicated region
      $region13: #{tpu_custom_call.1} parent=11 // pred_check
        %p153 = pneg %p84
      $region14: #{tpu_custom_call.1} parent=11 // pred_check_branch
        %155 = sbr.rel (%p153) target = $region16
      $region15: #{tpu_custom_call.1} parent=11 // pred_region
        %s156 = smul.u32 2, %s21
        %p157 = scmp.lt.s32.totalorder %s156, 1
        %s158 = scalar_select %p157, %s156, 1
        %p159 = scmp.lt.s32.totalorder %s20, 0
        %s160 = scalar_select %p159, %s20, 0
        %s161 = sadd.s32 %s160, %s158
        %s162 = smul.addr %s161, 4
        %s163 = scalar_lea.vmem %s1, %s162
        %s164 = smul.u32 2, %s21
      $region16: #{tpu_custom_call.1} parent=11 // pred_fallthru
        _
      // Predicated region
      $region17: #{tpu_custom_call.1} parent=11 // pred_check
        %p165 = pneg %p110
      $region18: #{tpu_custom_call.1} parent=11 // pred_check_branch
        %167 = sbr.rel (%p165) target = $region20
      $region19: #{tpu_custom_call.1} parent=11 // pred_region
        %p168 = scmp.lt.s32.totalorder %s20, 0
        %s169 = scalar_select %p168, %s20, 0
        %s170 = scalar_lea.vmem %s2, %s169
      $region20: #{tpu_custom_call.1} parent=11 // pred_fallthru
        _
    $region12: #{tpu_custom_call.1} parent=5 // pred_fallthru
      _
    %p171 = scmp.lt.s32.totalorder %s9, 2
    // Predicated region
    $region21: #{tpu_custom_call.1} parent=5 // pred_check
      %p172 = pneg %p171
    $region22: #{tpu_custom_call.1} parent=5 // pred_check_branch
      %174 = sbr.rel (%p172) target = $region24
    $region23: #{tpu_custom_call.1} parent=5 // pred_region
      // Predicated region
      $region25: #{tpu_custom_call.1} parent=23 // pred_check
        %p175 = pneg %p50
      $region26: #{tpu_custom_call.1} parent=23 // pred_check_branch
        %177 = sbr.rel (%p175) target = $region28
      $region27: #{tpu_custom_call.1} parent=23 // pred_region
        %p178 = scmp.lt.s32.totalorder %s16, 1
        %s179 = scalar_select %p178, %s16, 1
        %p180 = scmp.lt.s32.totalorder %s18, 0
        %s181 = scalar_select %p180, %s18, 0
        %s182 = smul.addr %s179, 9
        %s183 = sadd.s32 %s181, %s182
        %s184 = smul.addr %s183, 8
        %s185 = scalar_lea.vmem %s0, %s184
      $region28: #{tpu_custom_call.1} parent=23 // pred_fallthru
        _
    $region24: #{tpu_custom_call.1} parent=5 // pred_fallthru
      _
    %p186 = scmp.le.s32.totalorder 1, %s9
    %p187 = scmp.lt.s32.totalorder %s9, 3
    %p188 = pnand %p186, %p187
    %p189 = pneg %p188
    // Predicated region
    $region29: #{tpu_custom_call.1} parent=5 // pred_check
      _
    $region30: #{tpu_custom_call.1} parent=5 // pred_check_branch
      %191 = sbr.rel (%p188) target = $region32
    $region31: #{tpu_custom_call.1} parent=5 // pred_region
      %s192 = ssub.s32 %s9, 1
      %p193 = scmp.lt.s32.totalorder %s19, 1
      %s194 = scalar_select %p193, %s19, 1
      %p195 = scmp.lt.s32.totalorder %s21, 0
      %s196 = scalar_select %p195, %s21, 0
      %s197 = smul.addr %s194, 9
      %s198 = sadd.s32 %s196, %s197
      %s199 = smul.addr %s198, 8
      %s200 = scalar_lea.vmem %s0, %s199
      %p201 = pneg %p56
      %p202 = pneg %p53
      %s203 = smul.u32 2, %s21
      %p204 = scmp.lt.s32.totalorder %s203, 1
      %s205 = scalar_select %p204, %s203, 1
      %p206 = scmp.lt.s32.totalorder %s20, 0
      %s207 = scalar_select %p206, %s20, 0
      %s208 = sadd.s32 %s207, %s205
      %s209 = smul.addr %s208, 4
      %s210 = scalar_lea.vmem %s1, %s209
      %p211 = pneg %p84
      %p212 = pneg %p81
      %p213 = scmp.lt.s32.totalorder %s20, 0
      %s214 = scalar_select %p213, %s20, 0
      %s215 = scalar_lea.vmem %s2, %s214
      %p216 = pneg %p110
      %p217 = pneg %p107
      %p218 = pneg %p138
      %p219 = pneg %p135
      %p220 = scmp.lt.s32.totalorder %s19, 1
      %s221 = scalar_select %p220, %s19, 1
      %p222 = scmp.lt.s32.totalorder %s20, 0
      %s223 = scalar_select %p222, %s20, 0
      %s224 = smul.addr %s221, 5
      %s225 = sadd.s32 %s223, %s224
      %s226 = smul.addr %s225, 8
      %s227 = scalar_lea.vmem %s3, %s226
      %p228 = scmp.lt.s32.totalorder %s19, 1
      %s229 = scalar_select %p228, %s19, 1
      %p230 = scmp.lt.s32.totalorder %s21, 0
      %s231 = scalar_select %p230, %s21, 0
      %s232 = smul.addr %s229, 9
      %s233 = sadd.s32 %s231, %s232
      %s234 = smul.addr %s233, 8
      %s235 = scalar_lea.vmem %s0, %s234
      %s236 = smul.u32 2, %s21
      %p237 = scmp.lt.s32.totalorder %s236, 1
      %s238 = scalar_select %p237, %s236, 1
      %p239 = scmp.lt.s32.totalorder %s20, 0
      %s240 = scalar_select %p239, %s20, 0
      %s241 = sadd.s32 %s240, %s238
      %s242 = smul.addr %s241, 4
      %s243 = scalar_lea.vmem %s1, %s242
      %s244 = smul.u32 2, %s21
      %p245 = scmp.lt.s32.totalorder %s20, 0
      %s246 = scalar_select %p245, %s20, 0
      %s247 = scalar_lea.vmem %s2, %s246
      %p248 = scmp.lt.s32.totalorder %s19, 1
      %s249 = scalar_select %p248, %s19, 1
      %p250 = scmp.lt.s32.totalorder %s20, 0
      %s251 = scalar_select %p250, %s20, 0
      %s252 = smul.addr %s249, 5
      %s253 = sadd.s32 %s251, %s252
      %s254 = smul.addr %s253, 8
      %s255 = scalar_lea.vmem %s3, %s254
      %p257 = scmp.eq.s32.totalorder %s21, 0
      // Predicated region
      $region33: #{tpu_custom_call.1} parent=31 // pred_check
        %p258 = pneg %p257
      $region34: #{tpu_custom_call.1} parent=31 // pred_check_branch
        %260 = sbr.rel (%p258) target = $region36
      $region35: #{tpu_custom_call.1} parent=31 // pred_region
        %vm261 = vcmask 261120
        %262 = vst.msk [vmem:[#allocation2] sm:$0xff] %vm261, 0.0
        %263 = vst.msk [vmem:[#allocation2 + $0x8] sm:$0xff] %vm261, 0.0
        %264 = vst.msk [vmem:[#allocation2 + $0x10] sm:$0xff] %vm261, 0.0
        %265 = vst.msk [vmem:[#allocation2 + $0x18] sm:$0xff] %vm261, 0.0
        %266 = vst.msk [vmem:[#allocation2 + $0x20] sm:$0xff] %vm261, 0.0
      $region36: #{tpu_custom_call.1} parent=31 // pred_fallthru
        _
      %v267 = vld [vmem:[#allocation2] sm:$0xff]
      %v268 = vld [vmem:[#allocation2 + $0x8] sm:$0xff]
      %v269 = vld [vmem:[#allocation2 + $0x10] sm:$0xff]
      %v270 = vld [vmem:[#allocation2 + $0x18] sm:$0xff]
      %v271 = vld [vmem:[#allocation2 + $0x20] sm:$0xff]
      %v272 = vld [vmem:[%s235] sm:$0xff]
      %v273 = vld [vmem:[%s235 + $0x8] sm:$0xff]
      %v274 = vld [vmem:[%s235 + $0x10] sm:$0xff]
      %v275 = vld [vmem:[%s235 + $0x18] sm:$0xff]
      %v276 = vld [vmem:[%s235 + $0x20] sm:$0xff]
      %v277 = vpack.c.bf16 %v273, %v272
      %v278 = vpack.c.bf16 %v275, %v274
      %v279 = vpack.c.bf16 %v276, %v276
      %v280 = vld [vmem:[%s243] sm:$0xf]
      %v281 = vld [vmem:[%s243 + $0x4] sm:$0xf]
      %v284 = vunpack.c.l.b16 %v280
      %v285 = vunpack.c.l.b16 %v281
      %v286 = vpack.c.b16 %v285, %v284
      %vm288 = vcmask 130048
      %v290 = vsel %vm288, %v277, 0
      %v293 = vsel %vm288, %v278, 0
      %v296 = vsel %vm288, %v279, 0
      %298 = vmatpush.bf16.msra.mxu0 0
      %299 = vmatpush.bf16.msra.mxu0 0
      %300 = vmatpush.bf16.msra.mxu0 0
      %301 = vmatpush.bf16.msra.mxu0 0
      %302 = vmatpush.bf16.msra.mxu0 0
      %303 = vmatpush.bf16.msra.mxu0 0
      %304 = vmatpush.bf16.msra.mxu0 0
      %305 = vmatpush.bf16.msra.mxu0 %v286
      %306 = vmatmul.bf16.gmra.mxu0 %v290
      %v307 = vpop.f32.mrf.mxu0
      %v308 = vadd.f32 0.0, %v307
      %v309 = vpop.f32.mrf.mxu0
      %v310 = vadd.f32 0.0, %v309
      %311 = vmatmul.bf16.gmra.mxu0 %v293
      %v312 = vpop.f32.mrf.mxu0
      %v313 = vadd.f32 0.0, %v312
      %v314 = vpop.f32.mrf.mxu0
      %v315 = vadd.f32 0.0, %v314
      %316 = vmatmul.bf16.gmra.mxu0 %v296
      %v317 = vpop.f32.mrf.mxu0
      %v318 = vadd.f32 0.0, %v317
      %v319 = vpop.f32.mrf.mxu0
      %320 = vdwg.mxu0
      %v321 = vadd.f32 %v267, %v308
      %v322 = vadd.f32 %v268, %v310
      %v323 = vadd.f32 %v269, %v313
      %v324 = vadd.f32 %v270, %v315
      %v325 = vadd.f32 %v271, %v318
      %v326 = vld [vmem:[%s235 + $0x1] sm:$0xff]
      %v327 = vld [vmem:[%s235 + $0x9] sm:$0xff]
      %v328 = vld [vmem:[%s235 + $0x11] sm:$0xff]
      %v329 = vld [vmem:[%s235 + $0x19] sm:$0xff]
      %v330 = vld [vmem:[%s235 + $0x21] sm:$0xff]
      %v331 = vpack.c.bf16 %v327, %v326
      %v332 = vpack.c.bf16 %v329, %v328
      %v333 = vpack.c.bf16 %v330, %v330
      %s334 = scalar_lea.vmem %s243, 8
      %v335 = vld [vmem:[%s334] sm:$0xf]
      %v336 = vld [vmem:[%s334 + $0x4] sm:$0xf]
      %v339 = vunpack.c.l.b16 %v335
      %v340 = vunpack.c.l.b16 %v336
      %v341 = vpack.c.b16 %v340, %v339
      %v344 = vsel %vm288, %v331, 0
      %v347 = vsel %vm288, %v332, 0
      %v350 = vsel %vm288, %v333, 0
      %352 = vmatpush.bf16.msra.mxu0 0
      %353 = vmatpush.bf16.msra.mxu0 0
      %354 = vmatpush.bf16.msra.mxu0 0
      %355 = vmatpush.bf16.msra.mxu0 0
      %356 = vmatpush.bf16.msra.mxu0 0
      %357 = vmatpush.bf16.msra.mxu0 0
      %358 = vmatpush.bf16.msra.mxu0 0
      %359 = vmatpush.bf16.msra.mxu0 %v341
      %360 = vmatmul.bf16.gmra.mxu0 %v344
      %v361 = vpop.f32.mrf.mxu0
      %v362 = vadd.f32 0.0, %v361
      %v363 = vpop.f32.mrf.mxu0
      %v364 = vadd.f32 0.0, %v363
      %365 = vmatmul.bf16.gmra.mxu0 %v347
      %v366 = vpop.f32.mrf.mxu0
      %v367 = vadd.f32 0.0, %v366
      %v368 = vpop.f32.mrf.mxu0
      %v369 = vadd.f32 0.0, %v368
      %370 = vmatmul.bf16.gmra.mxu0 %v350
      %v371 = vpop.f32.mrf.mxu0
      %v372 = vadd.f32 0.0, %v371
      %v373 = vpop.f32.mrf.mxu0
      %374 = vdwg.mxu0
      %v375 = vadd.f32 %v321, %v362
      %v376 = vadd.f32 %v322, %v364
      %v377 = vadd.f32 %v323, %v367
      %v378 = vadd.f32 %v324, %v369
      %v379 = vadd.f32 %v325, %v372
      %v380 = vld [vmem:[%s235 + $0x2] sm:$0xff]
      %v381 = vld [vmem:[%s235 + $0xa] sm:$0xff]
      %v382 = vld [vmem:[%s235 + $0x12] sm:$0xff]
      %v383 = vld [vmem:[%s235 + $0x1a] sm:$0xff]
      %v384 = vld [vmem:[%s235 + $0x22] sm:$0xff]
      %v385 = vpack.c.bf16 %v381, %v380
      %v386 = vpack.c.bf16 %v383, %v382
      %v387 = vpack.c.bf16 %v384, %v384
      %s388 = scalar_lea.vmem %s243, 16
      %v389 = vld [vmem:[%s388] sm:$0xf]
      %v390 = vld [vmem:[%s388 + $0x4] sm:$0xf]
      %v393 = vunpack.c.l.b16 %v389
      %v394 = vunpack.c.l.b16 %v390
      %v395 = vpack.c.b16 %v394, %v393
      %v398 = vsel %vm288, %v385, 0
      %v401 = vsel %vm288, %v386, 0
      %v404 = vsel %vm288, %v387, 0
      %406 = vmatpush.bf16.msra.mxu0 0
      %407 = vmatpush.bf16.msra.mxu0 0
      %408 = vmatpush.bf16.msra.mxu0 0
      %409 = vmatpush.bf16.msra.mxu0 0
      %410 = vmatpush.bf16.msra.mxu0 0
      %411 = vmatpush.bf16.msra.mxu0 0
      %412 = vmatpush.bf16.msra.mxu0 0
      %413 = vmatpush.bf16.msra.mxu0 %v395
      %414 = vmatmul.bf16.gmra.mxu0 %v398
      %v415 = vpop.f32.mrf.mxu0
      %v416 = vadd.f32 0.0, %v415
      %v417 = vpop.f32.mrf.mxu0
      %v418 = vadd.f32 0.0, %v417
      %419 = vmatmul.bf16.gmra.mxu0 %v401
      %v420 = vpop.f32.mrf.mxu0
      %v421 = vadd.f32 0.0, %v420
      %v422 = vpop.f32.mrf.mxu0
      %v423 = vadd.f32 0.0, %v422
      %424 = vmatmul.bf16.gmra.mxu0 %v404
      %v425 = vpop.f32.mrf.mxu0
      %v426 = vadd.f32 0.0, %v425
      %v427 = vpop.f32.mrf.mxu0
      %428 = vdwg.mxu0
      %v429 = vadd.f32 %v375, %v416
      %v430 = vadd.f32 %v376, %v418
      %v431 = vadd.f32 %v377, %v421
      %v432 = vadd.f32 %v378, %v423
      %v433 = vadd.f32 %v379, %v426
      %v434 = vld [vmem:[%s235 + $0xa] sm:$0xff]
      %v435 = vld [vmem:[%s235 + $0x12] sm:$0xff]
      %v436 = vld [vmem:[%s235 + $0x1a] sm:$0xff]
      %v437 = vld [vmem:[%s235 + $0x22] sm:$0xff]
      %v438 = vld [vmem:[%s235 + $0x2a] sm:$0xff]
      %v439 = vpack.c.bf16 %v435, %v434
      %v440 = vpack.c.bf16 %v437, %v436
      %v441 = vpack.c.bf16 %v438, %v438
      %s442 = scalar_lea.vmem %s243, 24
      %v443 = vld [vmem:[%s442] sm:$0xf]
      %v444 = vld [vmem:[%s442 + $0x4] sm:$0xf]
      %v447 = vunpack.c.l.b16 %v443
      %v448 = vunpack.c.l.b16 %v444
      %v449 = vpack.c.b16 %v448, %v447
      %v452 = vsel %vm288, %v439, 0
      %v455 = vsel %vm288, %v440, 0
      %v458 = vsel %vm288, %v441, 0
      %460 = vmatpush.bf16.msra.mxu0 0
      %461 = vmatpush.bf16.msra.mxu0 0
      %462 = vmatpush.bf16.msra.mxu0 0
      %463 = vmatpush.bf16.msra.mxu0 0
      %464 = vmatpush.bf16.msra.mxu0 0
      %465 = vmatpush.bf16.msra.mxu0 0
      %466 = vmatpush.bf16.msra.mxu0 0
      %467 = vmatpush.bf16.msra.mxu0 %v449
      %468 = vmatmul.bf16.gmra.mxu0 %v452
      %v469 = vpop.f32.mrf.mxu0
      %v470 = vadd.f32 0.0, %v469
      %v471 = vpop.f32.mrf.mxu0
      %v472 = vadd.f32 0.0, %v471
      %473 = vmatmul.bf16.gmra.mxu0 %v455
      %v474 = vpop.f32.mrf.mxu0
      %v475 = vadd.f32 0.0, %v474
      %v476 = vpop.f32.mrf.mxu0
      %v477 = vadd.f32 0.0, %v476
      %478 = vmatmul.bf16.gmra.mxu0 %v458
      %v479 = vpop.f32.mrf.mxu0
      %v480 = vadd.f32 0.0, %v479
      %v481 = vpop.f32.mrf.mxu0
      %482 = vdwg.mxu0
      %v483 = vadd.f32 %v429, %v470
      %v484 = vadd.f32 %v430, %v472
      %v485 = vadd.f32 %v431, %v475
      %v486 = vadd.f32 %v432, %v477
      %v487 = vadd.f32 %v433, %v480
      %v488 = vld [vmem:[%s235 + $0xb] sm:$0xff]
      %v489 = vld [vmem:[%s235 + $0x13] sm:$0xff]
      %v490 = vld [vmem:[%s235 + $0x1b] sm:$0xff]
      %v491 = vld [vmem:[%s235 + $0x23] sm:$0xff]
      %v492 = vld [vmem:[%s235 + $0x2b] sm:$0xff]
      %v493 = vpack.c.bf16 %v489, %v488
      %v494 = vpack.c.bf16 %v491, %v490
      %v495 = vpack.c.bf16 %v492, %v492
      %s496 = scalar_lea.vmem %s243, 32
      %v497 = vld [vmem:[%s496] sm:$0xf]
      %v498 = vld [vmem:[%s496 + $0x4] sm:$0xf]
      %v501 = vunpack.c.l.b16 %v497
      %v502 = vunpack.c.l.b16 %v498
      %v503 = vpack.c.b16 %v502, %v501
      %v506 = vsel %vm288, %v493, 0
      %v509 = vsel %vm288, %v494, 0
      %v512 = vsel %vm288, %v495, 0
      %514 = vmatpush.bf16.msra.mxu0 0
      %515 = vmatpush.bf16.msra.mxu0 0
      %516 = vmatpush.bf16.msra.mxu0 0
      %517 = vmatpush.bf16.msra.mxu0 0
      %518 = vmatpush.bf16.msra.mxu0 0
      %519 = vmatpush.bf16.msra.mxu0 0
      %520 = vmatpush.bf16.msra.mxu0 0
      %521 = vmatpush.bf16.msra.mxu0 %v503
      %522 = vmatmul.bf16.gmra.mxu0 %v506
      %v523 = vpop.f32.mrf.mxu0
      %v524 = vadd.f32 0.0, %v523
      %v525 = vpop.f32.mrf.mxu0
      %v526 = vadd.f32 0.0, %v525
      %527 = vmatmul.bf16.gmra.mxu0 %v509
      %v528 = vpop.f32.mrf.mxu0
      %v529 = vadd.f32 0.0, %v528
      %v530 = vpop.f32.mrf.mxu0
      %v531 = vadd.f32 0.0, %v530
      %532 = vmatmul.bf16.gmra.mxu0 %v512
      %v533 = vpop.f32.mrf.mxu0
      %v534 = vadd.f32 0.0, %v533
      %v535 = vpop.f32.mrf.mxu0
      %536 = vdwg.mxu0
      %v537 = vadd.f32 %v483, %v524
      %v538 = vadd.f32 %v484, %v526
      %v539 = vadd.f32 %v485, %v529
      %v540 = vadd.f32 %v486, %v531
      %v541 = vadd.f32 %v487, %v534
      %v542 = vld [vmem:[%s235 + $0xc] sm:$0xff]
      %v543 = vld [vmem:[%s235 + $0x14] sm:$0xff]
      %v544 = vld [vmem:[%s235 + $0x1c] sm:$0xff]
      %v545 = vld [vmem:[%s235 + $0x24] sm:$0xff]
      %v546 = vld [vmem:[%s235 + $0x2c] sm:$0xff]
      %v547 = vpack.c.bf16 %v543, %v542
      %v548 = vpack.c.bf16 %v545, %v544
      %v549 = vpack.c.bf16 %v546, %v546
      %s550 = scalar_lea.vmem %s243, 40
      %v551 = vld [vmem:[%s550] sm:$0xf]
      %v552 = vld [vmem:[%s550 + $0x4] sm:$0xf]
      %v555 = vunpack.c.l.b16 %v551
      %v556 = vunpack.c.l.b16 %v552
      %v557 = vpack.c.b16 %v556, %v555
      %v560 = vsel %vm288, %v547, 0
      %v563 = vsel %vm288, %v548, 0
      %v566 = vsel %vm288, %v549, 0
      %568 = vmatpush.bf16.msra.mxu0 0
      %569 = vmatpush.bf16.msra.mxu0 0
      %570 = vmatpush.bf16.msra.mxu0 0
      %571 = vmatpush.bf16.msra.mxu0 0
      %572 = vmatpush.bf16.msra.mxu0 0
      %573 = vmatpush.bf16.msra.mxu0 0
      %574 = vmatpush.bf16.msra.mxu0 0
      %575 = vmatpush.bf16.msra.mxu0 %v557
      %576 = vmatmul.bf16.gmra.mxu0 %v560
      %v577 = vpop.f32.mrf.mxu0
      %v578 = vadd.f32 0.0, %v577
      %v579 = vpop.f32.mrf.mxu0
      %v580 = vadd.f32 0.0, %v579
      %581 = vmatmul.bf16.gmra.mxu0 %v563
      %v582 = vpop.f32.mrf.mxu0
      %v583 = vadd.f32 0.0, %v582
      %v584 = vpop.f32.mrf.mxu0
      %v585 = vadd.f32 0.0, %v584
      %586 = vmatmul.bf16.gmra.mxu0 %v566
      %v587 = vpop.f32.mrf.mxu0
      %v588 = vadd.f32 0.0, %v587
      %v589 = vpop.f32.mrf.mxu0
      %590 = vdwg.mxu0
      %v591 = vadd.f32 %v537, %v578
      %v592 = vadd.f32 %v538, %v580
      %v593 = vadd.f32 %v539, %v583
      %v594 = vadd.f32 %v540, %v585
      %v595 = vadd.f32 %v541, %v588
      %v596 = vld [vmem:[%s235 + $0x14] sm:$0xff]
      %v597 = vld [vmem:[%s235 + $0x1c] sm:$0xff]
      %v598 = vld [vmem:[%s235 + $0x24] sm:$0xff]
      %v599 = vld [vmem:[%s235 + $0x2c] sm:$0xff]
      %v600 = vld [vmem:[%s235 + $0x34] sm:$0xff]
      %v601 = vpack.c.bf16 %v597, %v596
      %v602 = vpack.c.bf16 %v599, %v598
      %v603 = vpack.c.bf16 %v600, %v600
      %s604 = scalar_lea.vmem %s243, 48
      %v605 = vld [vmem:[%s604] sm:$0xf]
      %v606 = vld [vmem:[%s604 + $0x4] sm:$0xf]
      %v609 = vunpack.c.l.b16 %v605
      %v610 = vunpack.c.l.b16 %v606
      %v611 = vpack.c.b16 %v610, %v609
      %v614 = vsel %vm288, %v601, 0
      %v617 = vsel %vm288, %v602, 0
      %v620 = vsel %vm288, %v603, 0
      %622 = vmatpush.bf16.msra.mxu0 0
      %623 = vmatpush.bf16.msra.mxu0 0
      %624 = vmatpush.bf16.msra.mxu0 0
      %625 = vmatpush.bf16.msra.mxu0 0
      %626 = vmatpush.bf16.msra.mxu0 0
      %627 = vmatpush.bf16.msra.mxu0 0
      %628 = vmatpush.bf16.msra.mxu0 0
      %629 = vmatpush.bf16.msra.mxu0 %v611
      %630 = vmatmul.bf16.gmra.mxu0 %v614
      %v631 = vpop.f32.mrf.mxu0
      %v632 = vadd.f32 0.0, %v631
      %v633 = vpop.f32.mrf.mxu0
      %v634 = vadd.f32 0.0, %v633
      %635 = vmatmul.bf16.gmra.mxu0 %v617
      %v636 = vpop.f32.mrf.mxu0
      %v637 = vadd.f32 0.0, %v636
      %v638 = vpop.f32.mrf.mxu0
      %v639 = vadd.f32 0.0, %v638
      %640 = vmatmul.bf16.gmra.mxu0 %v620
      %v641 = vpop.f32.mrf.mxu0
      %v642 = vadd.f32 0.0, %v641
      %v643 = vpop.f32.mrf.mxu0
      %644 = vdwg.mxu0
      %v645 = vadd.f32 %v591, %v632
      %v646 = vadd.f32 %v592, %v634
      %v647 = vadd.f32 %v593, %v637
      %v648 = vadd.f32 %v594, %v639
      %v649 = vadd.f32 %v595, %v642
      %v650 = vld [vmem:[%s235 + $0x15] sm:$0xff]
      %v651 = vld [vmem:[%s235 + $0x1d] sm:$0xff]
      %v652 = vld [vmem:[%s235 + $0x25] sm:$0xff]
      %v653 = vld [vmem:[%s235 + $0x2d] sm:$0xff]
      %v654 = vld [vmem:[%s235 + $0x35] sm:$0xff]
      %v655 = vpack.c.bf16 %v651, %v650
      %v656 = vpack.c.bf16 %v653, %v652
      %v657 = vpack.c.bf16 %v654, %v654
      %s658 = scalar_lea.vmem %s243, 56
      %v659 = vld [vmem:[%s658] sm:$0xf]
      %v660 = vld [vmem:[%s658 + $0x4] sm:$0xf]
      %v663 = vunpack.c.l.b16 %v659
      %v664 = vunpack.c.l.b16 %v660
      %v665 = vpack.c.b16 %v664, %v663
      %v668 = vsel %vm288, %v655, 0
      %v671 = vsel %vm288, %v656, 0
      %v674 = vsel %vm288, %v657, 0
      %676 = vmatpush.bf16.msra.mxu0 0
      %677 = vmatpush.bf16.msra.mxu0 0
      %678 = vmatpush.bf16.msra.mxu0 0
      %679 = vmatpush.bf16.msra.mxu0 0
      %680 = vmatpush.bf16.msra.mxu0 0
      %681 = vmatpush.bf16.msra.mxu0 0
      %682 = vmatpush.bf16.msra.mxu0 0
      %683 = vmatpush.bf16.msra.mxu0 %v665
      %684 = vmatmul.bf16.gmra.mxu0 %v668
      %v685 = vpop.f32.mrf.mxu0
      %v686 = vadd.f32 0.0, %v685
      %v687 = vpop.f32.mrf.mxu0
      %v688 = vadd.f32 0.0, %v687
      %689 = vmatmul.bf16.gmra.mxu0 %v671
      %v690 = vpop.f32.mrf.mxu0
      %v691 = vadd.f32 0.0, %v690
      %v692 = vpop.f32.mrf.mxu0
      %v693 = vadd.f32 0.0, %v692
      %694 = vmatmul.bf16.gmra.mxu0 %v674
      %v695 = vpop.f32.mrf.mxu0
      %v696 = vadd.f32 0.0, %v695
      %v697 = vpop.f32.mrf.mxu0
      %698 = vdwg.mxu0
      %v699 = vadd.f32 %v645, %v686
      %v700 = vadd.f32 %v646, %v688
      %v701 = vadd.f32 %v647, %v691
      %v702 = vadd.f32 %v648, %v693
      %v703 = vadd.f32 %v649, %v696
      %v704 = vld [vmem:[%s235 + $0x16] sm:$0xff]
      %v705 = vld [vmem:[%s235 + $0x1e] sm:$0xff]
      %v706 = vld [vmem:[%s235 + $0x26] sm:$0xff]
      %v707 = vld [vmem:[%s235 + $0x2e] sm:$0xff]
      %v708 = vld [vmem:[%s235 + $0x36] sm:$0xff]
      %v709 = vpack.c.bf16 %v705, %v704
      %v710 = vpack.c.bf16 %v707, %v706
      %v711 = vpack.c.bf16 %v708, %v708
      %s712 = scalar_lea.vmem %s243, 64
      %v713 = vld [vmem:[%s712] sm:$0xf]
      %v714 = vld [vmem:[%s712 + $0x4] sm:$0xf]
      %v717 = vunpack.c.l.b16 %v713
      %v718 = vunpack.c.l.b16 %v714
      %v719 = vpack.c.b16 %v718, %v717
      %v722 = vsel %vm288, %v709, 0
      %v725 = vsel %vm288, %v710, 0
      %v728 = vsel %vm288, %v711, 0
      %730 = vmatpush.bf16.msra.mxu0 0
      %731 = vmatpush.bf16.msra.mxu0 0
      %732 = vmatpush.bf16.msra.mxu0 0
      %733 = vmatpush.bf16.msra.mxu0 0
      %734 = vmatpush.bf16.msra.mxu0 0
      %735 = vmatpush.bf16.msra.mxu0 0
      %736 = vmatpush.bf16.msra.mxu0 0
      %737 = vmatpush.bf16.msra.mxu0 %v719
      %738 = vmatmul.bf16.gmra.mxu0 %v722
      %v739 = vpop.f32.mrf.mxu0
      %v740 = vadd.f32 0.0, %v739
      %v741 = vpop.f32.mrf.mxu0
      %v742 = vadd.f32 0.0, %v741
      %743 = vmatmul.bf16.gmra.mxu0 %v725
      %v744 = vpop.f32.mrf.mxu0
      %v745 = vadd.f32 0.0, %v744
      %v746 = vpop.f32.mrf.mxu0
      %v747 = vadd.f32 0.0, %v746
      %748 = vmatmul.bf16.gmra.mxu0 %v728
      %v749 = vpop.f32.mrf.mxu0
      %v750 = vadd.f32 0.0, %v749
      %v751 = vpop.f32.mrf.mxu0
      %752 = vdwg.mxu0
      %v753 = vadd.f32 %v699, %v740
      %v754 = vadd.f32 %v700, %v742
      %v755 = vadd.f32 %v701, %v745
      %v756 = vadd.f32 %v702, %v747
      %v757 = vadd.f32 %v703, %v750
      %vm758 = vcmask 261120
      %759 = vst.msk [vmem:[#allocation2] sm:$0xff] %vm758, %v753
      %760 = vst.msk [vmem:[#allocation2 + $0x8] sm:$0xff] %vm758, %v754
      %761 = vst.msk [vmem:[#allocation2 + $0x10] sm:$0xff] %vm758, %v755
      %762 = vst.msk [vmem:[#allocation2 + $0x18] sm:$0xff] %vm758, %v756
      %763 = vst.msk [vmem:[#allocation2 + $0x20] sm:$0xff] %vm758, %v757
      // Predicated region
      $region37: #{tpu_custom_call.1} parent=31 // pred_check
        %p764 = pneg %p257
      $region38: #{tpu_custom_call.1} parent=31 // pred_check_branch
        %766 = sbr.rel (%p764) target = $region40
      $region39: #{tpu_custom_call.1} parent=31 // pred_region
        %v767 = vld [vmem:[#allocation2] sm:$0xff]
        %v768 = vld [vmem:[#allocation2 + $0x8] sm:$0xff]
        %v769 = vld [vmem:[#allocation2 + $0x10] sm:$0xff]
        %v770 = vld [vmem:[#allocation2 + $0x18] sm:$0xff]
        %v771 = vld [vmem:[#allocation2 + $0x20] sm:$0xff]
        %v772 = vld [vmem:[%s247] sm:$0x1]
        %v774 = vperm.slane %v772, 0
        %v776 = vadd.f32 %v767, %v774
        %v777 = vadd.f32 %v768, %v774
        %v778 = vadd.f32 %v769, %v774
        %v779 = vadd.f32 %v770, %v774
        %v780 = vadd.f32 %v771, %v774
        %v781 = vmax.f32 %v776, 0.0
        %v782 = vmax.f32 %v777, 0.0
        %v783 = vmax.f32 %v778, 0.0
        %v784 = vmax.f32 %v779, 0.0
        %v785 = vmax.f32 %v780, 0.0
        %786 = vst.msk [vmem:[%s255] sm:$0xff] %vm758, %v781
        %787 = vst.msk [vmem:[%s255 + $0x8] sm:$0xff] %vm758, %v782
        %788 = vst.msk [vmem:[%s255 + $0x10] sm:$0xff] %vm758, %v783
        %789 = vst.msk [vmem:[%s255 + $0x18] sm:$0xff] %vm758, %v784
        %790 = vst.msk [vmem:[%s255 + $0x20] sm:$0xff] %vm758, %v785
      $region40: #{tpu_custom_call.1} parent=31 // pred_fallthru
        _
      %p791 = scmp.lt.s32.totalorder %s19, 1
      %s792 = scalar_select %p791, %s19, 1
      %p793 = scmp.lt.s32.totalorder %s20, 0
      %s794 = scalar_select %p793, %s20, 0
      %s795 = smul.addr %s792, 5
      %s796 = sadd.s32 %s794, %s795
      %s797 = smul.addr %s796, 8
      %s798 = scalar_lea.vmem %s3, %s797
      // Predicated region
      $region41: #{tpu_custom_call.1} parent=31 // pred_check
        %p799 = pneg %p135
      $region42: #{tpu_custom_call.1} parent=31 // pred_check_branch
        %801 = sbr.rel (%p799) target = $region44
      $region43: #{tpu_custom_call.1} parent=31 // pred_region
        _
      $region44: #{tpu_custom_call.1} parent=31 // pred_fallthru
        _
    $region32: #{tpu_custom_call.1} parent=5 // pred_fallthru
      _
    %p802 = scmp.le.s32.totalorder 2, %s9
    // Predicated region
    $region45: #{tpu_custom_call.1} parent=5 // pred_check
      %p803 = pneg %p802
    $region46: #{tpu_custom_call.1} parent=5 // pred_check_branch
      %805 = sbr.rel (%p803) target = $region48
    $region47: #{tpu_custom_call.1} parent=5 // pred_region
      %s806 = ssub.s32 %s9, 2
      // Predicated region
      $region49: #{tpu_custom_call.1} parent=47 // pred_check
        %p807 = pneg %p141
      $region50: #{tpu_custom_call.1} parent=47 // pred_check_branch
        %809 = sbr.rel (%p807) target = $region52
      $region51: #{tpu_custom_call.1} parent=47 // pred_region
        %p810 = scmp.lt.s32.totalorder %s22, 1
        %s811 = scalar_select %p810, %s22, 1
        %p812 = scmp.lt.s32.totalorder %s23, 0
        %s813 = scalar_select %p812, %s23, 0
        %s814 = smul.addr %s811, 5
        %s815 = sadd.s32 %s813, %s814
        %s816 = smul.addr %s815, 8
        %s817 = scalar_lea.vmem %s3, %s816
      $region52: #{tpu_custom_call.1} parent=47 // pred_fallthru
        _
    $region48: #{tpu_custom_call.1} parent=5 // pred_fallthru
      _
  $region6: #{tpu_custom_call.1} parent=0 // loop_footer
    %s13 = sadd.s32 1, %s9
  $region7: #{tpu_custom_call.1} parent=0 // loop_footer_branch
    %8 = sbr.rel target = $region3
  $region8: #{tpu_custom_call.1} parent=0 // loop_exit
    _

</llo_original>
